<compile_context>
chip_gen: v7x
topology: tpu7x:2x2x1
jax: 0.10.0
libtpu: 0.0.40
codegen_flags: <defaults>
</compile_context>

<pallas_src>
import jax
import jax.numpy as jnp
from jax.experimental import pallas as pl
from jax.experimental.pallas import tpu as pltpu

_LANES = 128
_SUBLANES = 8
_MAX_BLOCK_ROWS = 2048  # (2048, 128) f32 = 1 MiB per input per grid step


def _dice_partial_kernel(x_ref, y_ref, xy_ref, s_ref):
    """Accumulate (8,128) vector partials of sum(x*y) and sum(x+y)."""
    # One accumulator slot per core; init at each core's first reduction step.
    @pl.when(pl.program_id(1) == 0)
    def _():
        xy_ref[...] = jnp.zeros_like(xy_ref)
        s_ref[...] = jnp.zeros_like(s_ref)

    x = x_ref[...].astype(jnp.float32)
    y = y_ref[...].astype(jnp.float32)

    # Fold (block_rows, 128) -> (block_rows//8, 8, 128) and reduce the leading
    # axis: layout-trivial reshape + pure VPU adds (no per-step XLU reduce).
    xf = x.reshape(-1, _SUBLANES, _LANES)
    yf = y.reshape(-1, _SUBLANES, _LANES)
    xy_ref[...] += jnp.sum(xf * yf, axis=0)
    s_ref[...] += jnp.sum(xf + yf, axis=0)


def dice_loss(inputs, targets, smooth=1e-05):
    """Pallas TPU implementation of DiceLoss.forward (returns a scalar)."""
    x = jnp.ravel(inputs)
    y = jnp.ravel(targets)
    n = x.shape[0]

    # Minimal zero-padding: only up to a multiple of 128 lanes (and at least
    # one (8,128) tile).  Typical activation sizes need no padding -> no extra
    # HBM copy.  Zero padding is sum-neutral for all reductions.
    n_pad = max(pl.cdiv(n, _LANES) * _LANES, _SUBLANES * _LANES)
    if n_pad != n:
        x = jnp.pad(x, (0, n_pad - n))
        y = jnp.pad(y, (0, n_pad - n))

    rows = n_pad // _LANES
    x2 = x.reshape(rows, _LANES)  # free reshape, no copy
    y2 = y.reshape(rows, _LANES)

    # Block rows: multiple of 8, capped at 2048 (1 MiB f32 tiles).
    block_rows = min(_MAX_BLOCK_ROWS, (rows // _SUBLANES) * _SUBLANES)
    blocks_total = rows // block_rows
    # Shard full blocks across 2 TensorCores when there is enough work
    # (only pays off on v7x; serial and harmless on 1-TC chips).
    num_cores = 2 if blocks_total >= 2 else 1
    blocks_per_core = blocks_total // num_cores
    rows_main = num_cores * blocks_per_core * block_rows

    in_map = lambda c, i: (c * blocks_per_core + i, 0)
    out_map = lambda c, i: (c, 0, 0)

    acc_xy, acc_s = pl.pallas_call(
        _dice_partial_kernel,
        out_shape=(
            jax.ShapeDtypeStruct((num_cores, _SUBLANES, _LANES), jnp.float32),
            jax.ShapeDtypeStruct((num_cores, _SUBLANES, _LANES), jnp.float32),
        ),
        grid_spec=pltpu.PrefetchScalarGridSpec(
            num_scalar_prefetch=0,
            grid=(num_cores, blocks_per_core),
            in_specs=[
                pl.BlockSpec((block_rows, _LANES), in_map),
                pl.BlockSpec((block_rows, _LANES), in_map),
            ],
            out_specs=(
                pl.BlockSpec((None, _SUBLANES, _LANES), out_map),
                pl.BlockSpec((None, _SUBLANES, _LANES), out_map),
            ),
        ),
        compiler_params=pltpu.CompilerParams(
            dimension_semantics=("parallel", "arbitrary")
        ),
    )(x2, y2)

    # Single cross-lane reduce of the vreg partials (once, not per step).
    inter = jnp.sum(acc_xy)
    s = jnp.sum(acc_s)

    # Rows not covered by full blocks (< 2*block_rows rows): tiny jnp tail
    # reduction instead of materializing padded copies of the whole array.
    if rows_main < rows:
        xt = x2[rows_main:].astype(jnp.float32)
        yt = y2[rows_main:].astype(jnp.float32)
        inter = inter + jnp.sum(xt * yt)
        s = s + jnp.sum(xt) + jnp.sum(yt)

    smooth = jnp.float32(smooth)
    dice = (2.0 * inter + smooth) / (s + smooth)
    return jnp.float32(1.0) - dice


def dice_loss_ref(inputs, targets, smooth=1e-05):
    x = jnp.ravel(inputs).astype(jnp.float32)
    y = jnp.ravel(targets).astype(jnp.float32)
    inter = jnp.sum(x * y)
    dice = (2.0 * inter + smooth) / (jnp.sum(x) + jnp.sum(y) + smooth)
    return 1.0 - dice


if __name__ == "__main__":
    key = jax.random.PRNGKey(0)
    k1, k2 = jax.random.split(key)
    # Shapes consistent with a segmentation head: NCHW [2, 4, 16, 16].
    inputs = jax.nn.sigmoid(jax.random.normal(k1, (2, 4, 16, 16), jnp.float32))
    targets = (jax.random.uniform(k2, (2, 4, 16, 16)) > 0.5).astype(jnp.float32)

    loss = dice_loss(inputs, targets)
    jax.block_until_ready(loss)

    ref = dice_loss_ref(inputs, targets)
    assert jnp.allclose(loss, ref, rtol=1e-5, atol=1e-6), (loss, ref)
    print("KERNEL_OK")
</pallas_src>

<mosaic_0001>
module attributes {stable_mosaic.version = 11 : i64} {
  func.func @_dice_partial_kernel(%arg0: i32, %arg1: i32, %arg2: memref<16x128xf32, #tpu.memory_space<vmem>>, %arg3: memref<16x128xf32, #tpu.memory_space<vmem>>, %arg4: memref<1x8x128xf32, #tpu.memory_space<vmem>>, %arg5: memref<1x8x128xf32, #tpu.memory_space<vmem>>) attributes {dimension_semantics = [#tpu.dimension_semantics<parallel>, #tpu.dimension_semantics<arbitrary>], iteration_bounds = array<i64: 1, 1>, scalar_prefetch = 0 : i64, scratch_operands = 0 : i64, tpu.core_type = #tpu.core_type<tc>, window_params = [{transform_indices = @transform_0, window_bounds = array<i64: 16, 128>}, {transform_indices = @transform_1, window_bounds = array<i64: 16, 128>}, {transform_indices = @transform_2, window_bounds = array<i64: 1, 8, 128>}, {transform_indices = @transform_3, window_bounds = array<i64: 1, 8, 128>}]} {
    %c0_i32 = arith.constant 0 : i32
    %0 = arith.cmpi eq, %arg1, %c0_i32 : i32
    %1 = arith.extui %0 : i1 to i32
    %c0_i32_0 = arith.constant 0 : i32
    %2 = arith.cmpi ne, %1, %c0_i32_0 : i32
    scf.if %2 {
      %cst_17 = arith.constant 0.000000e+00 : f32
      %23 = vector.broadcast %cst_17 : f32 to vector<8x128xf32>
      %c0_18 = arith.constant 0 : index
      %c0_19 = arith.constant 0 : index
      %c0_20 = arith.constant 0 : index
      %24 = vector.load %arg4[%c0_18, %c0_19, %c0_20] : memref<1x8x128xf32, #tpu.memory_space<vmem>>, vector<1x8x128xf32>
      %25 = vector.shape_cast %24 : vector<1x8x128xf32> to vector<8x128xf32>
      %26 = vector.shape_cast %23 : vector<8x128xf32> to vector<1x8x128xf32>
      tpu.vector_store %arg4[%c0_18, %c0_19, %c0_20], %26 {strides = array<i32>} : memref<1x8x128xf32, #tpu.memory_space<vmem>>, vector<1x8x128xf32>,
      %cst_21 = arith.constant 0.000000e+00 : f32
      %27 = vector.broadcast %cst_21 : f32 to vector<8x128xf32>
      %c0_22 = arith.constant 0 : index
      %c0_23 = arith.constant 0 : index
      %c0_24 = arith.constant 0 : index
      %28 = vector.load %arg5[%c0_22, %c0_23, %c0_24] : memref<1x8x128xf32, #tpu.memory_space<vmem>>, vector<1x8x128xf32>
      %29 = vector.shape_cast %28 : vector<1x8x128xf32> to vector<8x128xf32>
      %30 = vector.shape_cast %27 : vector<8x128xf32> to vector<1x8x128xf32>
      tpu.vector_store %arg5[%c0_22, %c0_23, %c0_24], %30 {strides = array<i32>} : memref<1x8x128xf32, #tpu.memory_space<vmem>>, vector<1x8x128xf32>,
    } else {
    }
    %c0 = arith.constant 0 : index
    %c0_1 = arith.constant 0 : index
    %3 = vector.load %arg2[%c0, %c0_1] : memref<16x128xf32, #tpu.memory_space<vmem>>, vector<16x128xf32>
    %c0_2 = arith.constant 0 : index
    %c0_3 = arith.constant 0 : index
    %4 = vector.load %arg3[%c0_2, %c0_3] : memref<16x128xf32, #tpu.memory_space<vmem>>, vector<16x128xf32>
    %5 = vector.shape_cast %3 : vector<16x128xf32> to vector<2x8x128xf32>
    %6 = vector.shape_cast %4 : vector<16x128xf32> to vector<2x8x128xf32>
    %c0_4 = arith.constant 0 : index
    %c0_5 = arith.constant 0 : index
    %c0_6 = arith.constant 0 : index
    %7 = vector.load %arg4[%c0_4, %c0_5, %c0_6] : memref<1x8x128xf32, #tpu.memory_space<vmem>>, vector<1x8x128xf32>
    %8 = vector.shape_cast %7 : vector<1x8x128xf32> to vector<8x128xf32>
    %9 = arith.mulf %5, %6 : vector<2x8x128xf32>
    %cst = arith.constant dense<0.000000e+00> : vector<8x128xf32>
    %10 = vector.multi_reduction <add>, %9, %cst [0] : vector<2x8x128xf32> to vector<8x128xf32>
    %11 = arith.addf %8, %10 : vector<8x128xf32>
    %c0_7 = arith.constant 0 : index
    %c0_8 = arith.constant 0 : index
    %c0_9 = arith.constant 0 : index
    %12 = vector.load %arg4[%c0_7, %c0_8, %c0_9] : memref<1x8x128xf32, #tpu.memory_space<vmem>>, vector<1x8x128xf32>
    %13 = vector.shape_cast %12 : vector<1x8x128xf32> to vector<8x128xf32>
    %14 = vector.shape_cast %11 : vector<8x128xf32> to vector<1x8x128xf32>
    tpu.vector_store %arg4[%c0_7, %c0_8, %c0_9], %14 {strides = array<i32>} : memref<1x8x128xf32, #tpu.memory_space<vmem>>, vector<1x8x128xf32>,
    %c0_10 = arith.constant 0 : index
    %c0_11 = arith.constant 0 : index
    %c0_12 = arith.constant 0 : index
    %15 = vector.load %arg5[%c0_10, %c0_11, %c0_12] : memref<1x8x128xf32, #tpu.memory_space<vmem>>, vector<1x8x128xf32>
    %16 = vector.shape_cast %15 : vector<1x8x128xf32> to vector<8x128xf32>
    %17 = arith.addf %5, %6 : vector<2x8x128xf32>
    %cst_13 = arith.constant dense<0.000000e+00> : vector<8x128xf32>
    %18 = vector.multi_reduction <add>, %17, %cst_13 [0] : vector<2x8x128xf32> to vector<8x128xf32>
    %19 = arith.addf %16, %18 : vector<8x128xf32>
    %c0_14 = arith.constant 0 : index
    %c0_15 = arith.constant 0 : index
    %c0_16 = arith.constant 0 : index
    %20 = vector.load %arg5[%c0_14, %c0_15, %c0_16] : memref<1x8x128xf32, #tpu.memory_space<vmem>>, vector<1x8x128xf32>
    %21 = vector.shape_cast %20 : vector<1x8x128xf32> to vector<8x128xf32>
    %22 = vector.shape_cast %19 : vector<8x128xf32> to vector<1x8x128xf32>
    tpu.vector_store %arg5[%c0_14, %c0_15, %c0_16], %22 {strides = array<i32>} : memref<1x8x128xf32, #tpu.memory_space<vmem>>, vector<1x8x128xf32>,
    return
  }
  func.func @transform_0(%arg0: i32, %arg1: i32) -> (i32, i32) {
    %c1_i32 = arith.constant 1 : i32
    %0 = arith.muli %arg0, %c1_i32 : i32
    %1 = arith.addi %0, %arg1 : i32
    %c0_i32 = arith.constant 0 : i32
    %c0_i32_0 = arith.constant 0 : i32
    return %1, %c0_i32 : i32, i32
  }
  func.func @transform_1(%arg0: i32, %arg1: i32) -> (i32, i32) {
    %c1_i32 = arith.constant 1 : i32
    %0 = arith.muli %arg0, %c1_i32 : i32
    %1 = arith.addi %0, %arg1 : i32
    %c0_i32 = arith.constant 0 : i32
    %c0_i32_0 = arith.constant 0 : i32
    return %1, %c0_i32 : i32, i32
  }
  func.func @transform_2(%arg0: i32, %arg1: i32) -> (i32, i32, i32) {
    %c0_i32 = arith.constant 0 : i32
    %c0_i32_0 = arith.constant 0 : i32
    %c0_i32_1 = arith.constant 0 : i32
    return %arg0, %c0_i32, %c0_i32_0 : i32, i32, i32
  }
  func.func @transform_3(%arg0: i32, %arg1: i32) -> (i32, i32, i32) {
    %c0_i32 = arith.constant 0 : i32
    %c0_i32_0 = arith.constant 0 : i32
    %c0_i32_1 = arith.constant 0 : i32
    return %arg0, %c0_i32, %c0_i32_0 : i32, i32, i32
  }
}

</mosaic_0001>

<llo_original>
// kernel: tpu_custom_call.1
$region0: #{tpu_custom_call.1}
  #allocation0 [shape = 'u32[]', space=smem, size = 0x4, offset = 0x4, fixed_abs, tag = 'smem constant byte address 0x4 - core index']
  #allocation1 [shape = 'u32[144,128]{1,0:T(1,128)}', space=vmem, size = 0x12000, scoped, tag = 'internal scratch']
  %s0 = inlined_call_operand.hbm [shape: f32[16,128], index: 0, kind: input, shape index: {}]
  %s1 = inlined_call_operand.hbm [shape: f32[16,128], index: 1, kind: input, shape index: {}]
  %s2 = inlined_call_operand.hbm [shape: f32[1,8,128], index: 2, kind: output, shape index: {0}]
  %s3 = inlined_call_operand.hbm [shape: f32[1,8,128], index: 3, kind: output, shape index: {1}]
  %4 = xla_tuple %s2, %s3
  %s5 = sld [smem:[#allocation0]]
  $region38: #{tpu_custom_call.1} parent=0
    _
  %s7 = ssub.s32 1, %s5
  %s8 = scalar_select 0, %s7, %s5
  $region1: #{tpu_custom_call.1} parent=0
    #allocation2 [shape = 'u8[8192]{0}', space=vmem, size = 0x2000, scoped, tag = 'input window, operand 0, single buffered']
    #allocation3 [shape = 's32[1]{0}', space=sflag, size = 0x4, scoped, tag = 'scoped memory for tpu_custom_call.1']
    #allocation4 [shape = 's32[1]{0}', space=sflag, size = 0x4, scoped, tag = 'scoped memory for tpu_custom_call.1']
    #allocation5 [shape = 'u8[8192]{0}', space=vmem, size = 0x2000, scoped, tag = 'input window, operand 1, single buffered']
    #allocation6 [shape = 's32[1]{0}', space=sflag, size = 0x4, scoped, tag = 'scoped memory for tpu_custom_call.1']
    #allocation7 [shape = 'u8[4096]{0}', space=vmem, size = 0x1000, scoped, tag = 'output window, operand 0, single buffered']
    #allocation8 [shape = 'u8[4096]{0}', space=vmem, size = 0x1000, scoped, tag = 'output window, operand 1, single buffered']
    #allocation9 [shape = 's32[1]{0}', space=sflag, size = 0x4, scoped, tag = 'scoped memory for tpu_custom_call.1']
    %9 = vsyncpa [#allocation3], 0
    %10 = vsyncpa [#allocation6], 0
    %11 = vsyncpa [#allocation4], 0
    %12 = vsyncpa [#allocation9], 0
    // Predicated region
    $region2: #{tpu_custom_call.1} parent=1 // pred_check
      _
    $region3: #{tpu_custom_call.1} parent=1 // pred_check_branch
      %14 = sbr.rel (0) target = $region5
    $region4: #{tpu_custom_call.1} parent=1 // pred_region
      %s15 = sadd.s32 0, 0
      %s16 = smul.u32 2, %s15
      %s18 = ssub.s32 256, 256
      %19 = vsyncadd [#allocation3], %s18
      %s20 = smul.addr %s16, 128
      %s21 = scalar_lea.hbm %s0, %s20
      %s22 = sshll.u32 [#allocation2], 4
      %s23 = int_to_ptr.vmem [resolvable:$true] %s22
      %28 = dma.hbm_to_vmem [thread:$0]  %s21, 256, %s23, [#allocation3], 128, 128, 8
    $region5: #{tpu_custom_call.1} parent=1 // pred_fallthru
      _
    // Predicated region
    $region6: #{tpu_custom_call.1} parent=1 // pred_check
      _
    $region7: #{tpu_custom_call.1} parent=1 // pred_check_branch
      %30 = sbr.rel (0) target = $region9
    $region8: #{tpu_custom_call.1} parent=1 // pred_region
      %s31 = sadd.s32 0, 0
      %s32 = smul.u32 2, %s31
      %s34 = ssub.s32 256, 256
      %35 = vsyncadd [#allocation6], %s34
      %s36 = smul.addr %s32, 128
      %s37 = scalar_lea.hbm %s1, %s36
      %s38 = sshll.u32 [#allocation5], 4
      %s39 = int_to_ptr.vmem [resolvable:$true] %s38
      %44 = dma.hbm_to_vmem [thread:$0]  %s37, 256, %s39, [#allocation6], 128, 128, 8
    $region9: #{tpu_custom_call.1} parent=1 // pred_fallthru
      _
    // Predicated region
    $region10: #{tpu_custom_call.1} parent=1 // pred_check
      _
    $region11: #{tpu_custom_call.1} parent=1 // pred_check_branch
      %46 = sbr.rel (0) target = $region13
    $region12: #{tpu_custom_call.1} parent=1 // pred_region
      %47 = dma.done [#allocation3], 256
    $region13: #{tpu_custom_call.1} parent=1 // pred_fallthru
      _
    // Predicated region
    $region14: #{tpu_custom_call.1} parent=1 // pred_check
      _
    $region15: #{tpu_custom_call.1} parent=1 // pred_check_branch
      %49 = sbr.rel (0) target = $region17
    $region16: #{tpu_custom_call.1} parent=1 // pred_region
      %50 = dma.done [#allocation6], 256
    $region17: #{tpu_custom_call.1} parent=1 // pred_fallthru
      _
    %s51 = sadd.s32 0, 0
    %s52 = smul.u32 2, %s51
    %s53 = sadd.s32 0, 0
    %s54 = smul.u32 2, %s53
    %p55 = scmp.eq.s32.totalorder 0, 0
    // Predicated region
    $region18: #{tpu_custom_call.1} parent=1 // pred_check
      %p56 = pneg %p55
    $region19: #{tpu_custom_call.1} parent=1 // pred_check_branch
      %58 = sbr.rel (%p56) target = $region21
    $region20: #{tpu_custom_call.1} parent=1 // pred_region
      %59 = vst [vmem:[#allocation7] sm:$0xff] 0.0
      %60 = vst [vmem:[#allocation8] sm:$0xff] 0.0
    $region21: #{tpu_custom_call.1} parent=1 // pred_fallthru
      _
    %v61 = vld [vmem:[#allocation2] sm:$0xff]
    %v62 = vld [vmem:[#allocation2 + $0x8] sm:$0xff]
    %v63 = vld [vmem:[#allocation5] sm:$0xff]
    %v64 = vld [vmem:[#allocation5 + $0x8] sm:$0xff]
    %v65 = vld [vmem:[#allocation7] sm:$0xff]
    %v66 = vmul.f32 %v61, %v63
    %v67 = vmul.f32 %v62, %v64
    %v68 = vadd.f32 %v66, %v67
    %v69 = vadd.f32 %v65, %v68
    %70 = vst [vmem:[#allocation7] sm:$0xff] %v69
    %v71 = vld [vmem:[#allocation8] sm:$0xff]
    %v72 = vadd.f32 %v61, %v63
    %v73 = vadd.f32 %v62, %v64
    %v74 = vadd.f32 %v72, %v73
    %v75 = vadd.f32 %v71, %v74
    %76 = vst [vmem:[#allocation8] sm:$0xff] %v75
    // Predicated region
    $region22: #{tpu_custom_call.1} parent=1 // pred_check
      _
    $region23: #{tpu_custom_call.1} parent=1 // pred_check_branch
      %78 = sbr.rel (0) target = $region25
    $region24: #{tpu_custom_call.1} parent=1 // pred_region
      %s80 = ssub.s32 128, 128
      %81 = vsyncadd [#allocation4], %s80
      %s83 = sshll.u32 [#allocation7], 4
      %s84 = int_to_ptr.vmem [resolvable:$true] %s83
      %86 = dma.vmem_to_hbm [thread:$0]  %s84, 128, %s2, [#allocation4]
    $region25: #{tpu_custom_call.1} parent=1 // pred_fallthru
      _
    // Predicated region
    $region26: #{tpu_custom_call.1} parent=1 // pred_check
      _
    $region27: #{tpu_custom_call.1} parent=1 // pred_check_branch
      %88 = sbr.rel (0) target = $region29
    $region28: #{tpu_custom_call.1} parent=1 // pred_region
      %s90 = ssub.s32 128, 128
      %91 = vsyncadd [#allocation9], %s90
      %s93 = sshll.u32 [#allocation8], 4
      %s94 = int_to_ptr.vmem [resolvable:$true] %s93
      %96 = dma.vmem_to_hbm [thread:$0]  %s94, 128, %s3, [#allocation9]
    $region29: #{tpu_custom_call.1} parent=1 // pred_fallthru
      _
    // Predicated region
    $region30: #{tpu_custom_call.1} parent=1 // pred_check
      _
    $region31: #{tpu_custom_call.1} parent=1 // pred_check_branch
      %98 = sbr.rel (0) target = $region33
    $region32: #{tpu_custom_call.1} parent=1 // pred_region
      %99 = dma.done [#allocation4], 128
    $region33: #{tpu_custom_call.1} parent=1 // pred_fallthru
      _
    // Predicated region
    $region34: #{tpu_custom_call.1} parent=1 // pred_check
      _
    $region35: #{tpu_custom_call.1} parent=1 // pred_check_branch
      %101 = sbr.rel (0) target = $region37
    $region36: #{tpu_custom_call.1} parent=1 // pred_region
      %102 = dma.done [#allocation9], 128
    $region37: #{tpu_custom_call.1} parent=1 // pred_fallthru
      _
    %103 = vsyncpa [#allocation3], 1
    %104 = vsyncpa [#allocation6], 1
    %105 = vsyncpa [#allocation4], 1
    %106 = vsyncpa [#allocation9], 1

</llo_original>
